<compile_context>
chip_gen: v7x
topology: tpu7x:2x2x1
jax: 0.10.0
libtpu: 0.0.40
codegen_flags: <defaults>
</compile_context>

<pallas_src>
import jax
import jax.numpy as jnp
from jax.experimental import pallas as pl
from jax.experimental.pallas import tpu as pltpu


_ROW_TILE_CAP = 1024              # 512-row tiles already ~85% of HBM roofline
_MIN_ROWS_BEFORE_COL_SPLIT = 256  # below this, split classes instead of rows
_COL_TILE_CAP = 2048              # per-step class chunk when C is split (x128)
_F32_TEMP_COPIES = 4              # x/y f32 casts + exp(x-m) + y*x
_FALLBACK_VMEM_BYTES = 64 << 20   # v7x physical VMEM (most restrictive chip)


def _round_up(a, b):
    return -(-a // b) * b


def _vmem_capacity_bytes():
    try:
        return int(pltpu.get_tpu_info().vmem_capacity_bytes)
    except Exception:
        return _FALLBACK_VMEM_BYTES


def _num_tensorcores():
    """Best-effort TensorCores-per-chip (v7x = 2).  Falls back to 1."""
    try:
        info = pltpu.get_tpu_info()
    except Exception:
        return 1
    for name in ("num_cores", "num_tensorcores", "tensorcore_count", "core_count"):
        v = getattr(info, name, None)
        if isinstance(v, int) and 1 <= v <= 16:
            return v
    return 1


def _footprint_bytes(block_rows, block_cols, x_item, y_item, buffer_count):
    inputs = buffer_count * block_rows * block_cols * (x_item + y_item)
    f32_temps = _F32_TEMP_COPIES * block_rows * block_cols * 4
    small = 16 * block_rows * 4 + (4 << 10)   # scratch accumulators + output
    return inputs + f32_temps + small


def _choose_blocks(n_rows, n_cols, x_dtype, y_dtype, buffer_count):
    """(block_rows, block_cols) under a budget counting inputs + f32 temps."""
    x_item = jnp.dtype(x_dtype).itemsize
    y_item = jnp.dtype(y_dtype).itemsize
    budget = min(int(_vmem_capacity_bytes() * 0.45), 48 << 20)
    rows_all = _round_up(n_rows, 8)

    def fits(br, bc):
        return _footprint_bytes(br, bc, x_item, y_item, buffer_count) <= budget

    # Path 1: full C per step; shrink the row tile (but not below ~256 rows).
    br = max(8, (min(_ROW_TILE_CAP, rows_all) // 8) * 8)
    while br > 8 and not fits(br, n_cols):
        br = max(8, ((br // 2) // 8) * 8)
    if fits(br, n_cols) and (br >= min(_MIN_ROWS_BEFORE_COL_SPLIT, rows_all)
                             or n_cols <= 128):
        return br, n_cols

    # Path 2 (very large C): split classes, keep the row tile big.
    bc = max(128, (min(_COL_TILE_CAP, _round_up(n_cols, 128)) // 128) * 128)
    br = max(8, (min(512, rows_all) // 8) * 8)
    while bc > 128 and not fits(br, bc):
        bc = max(128, ((bc // 2) // 128) * 128)
    while br > 8 and not fits(br, bc):
        br = max(8, ((br // 2) // 8) * 8)
    return br, bc


def _make_kernel(n_classes, block_cols, assume_normalized_targets, need_col_mask):
    """Online-logsumexp soft-target CE over a 2-D (row-tile, class-tile) grid."""

    def kernel(x_ref, y_ref, loss_ref, m_ref, l_ref, sy_ref, syx_ref):
        j = pl.program_id(1)

        @pl.when(j == 0)
        def _init():
            m_ref[...] = jnp.full(m_ref.shape, -jnp.inf, jnp.float32)
            l_ref[...] = jnp.zeros(l_ref.shape, jnp.float32)
            sy_ref[...] = jnp.zeros(sy_ref.shape, jnp.float32)
            syx_ref[...] = jnp.zeros(syx_ref.shape, jnp.float32)

        x = x_ref[...].astype(jnp.float32)
        y = y_ref[...].astype(jnp.float32)

        if need_col_mask:
            # Last class tile is partial: mask OOB columns so garbage never
            # contaminates the row reductions.
            col_ids = jax.lax.broadcasted_iota(jnp.int32, x.shape, 1) + j * block_cols
            valid = col_ids < n_classes
            x_lse = jnp.where(valid, x, -jnp.inf)
            yx = jnp.where(valid, y * x, 0.0)
            y = jnp.where(valid, y, 0.0)
        else:
            x_lse = x
            yx = y * x

        # Online (flash-style) max / logsumexp across class tiles.
        m_tile = jnp.max(x_lse, axis=-1, keepdims=True)
        m_new = jnp.maximum(m_ref[...], m_tile)
        alpha = jnp.exp(m_ref[...] - m_new)
        l_ref[...] = alpha * l_ref[...] + jnp.sum(
            jnp.exp(x_lse - m_new), axis=-1, keepdims=True)
        syx_ref[...] = syx_ref[...] + jnp.sum(yx, axis=-1, keepdims=True)
        if not assume_normalized_targets:
            sy_ref[...] = sy_ref[...] + jnp.sum(y, axis=-1, keepdims=True)
        m_ref[...] = m_new

        @pl.when(j == pl.num_programs(1) - 1)
        def _finalize():
            lse = m_ref[...] + jnp.log(l_ref[...])
            if assume_normalized_targets:
                loss = lse - syx_ref[...]
            else:
                loss = lse * sy_ref[...] - syx_ref[...]
            loss_ref[...] = loss.astype(loss_ref.dtype)

    return kernel


def soft_target_cross_entropy(
    x, y, reduction="mean", *,
    assume_normalized_targets=False,
    block_rows=None, block_cols=None,
    input_buffer_count=2,
    core_parallel=None,
):
    """Pallas implementation of SoftTargetCrossEntropy.forward(x, y).

    loss_i = sum_c(-y[i, c] * log_softmax(x[i], -1)[c]).  Returns the mean for
    reduction='mean', per-row f32 losses for reduction='none'.
    """
    assert x.shape == y.shape and x.ndim == 2, "expect (N, C) logits and soft targets"
    N, C = x.shape
    buffer_count = max(2, int(input_buffer_count))

    auto_br, auto_bc = _choose_blocks(N, C, x.dtype, y.dtype, buffer_count)
    br = auto_br if block_rows is None else int(block_rows)
    bc = auto_bc if block_cols is None else int(block_cols)
    # Sanitize: rows a multiple of 8 (capped at the data), cols either the full
    # C or a multiple of 128 (TPU (8, 128) tiling constraint).
    br = max(8, (min(br, _round_up(N, 8)) // 8) * 8)
    bc = C if (bc >= C or C <= 128) else max(128, (bc // 128) * 128)

    grid = (pl.cdiv(N, br), pl.cdiv(C, bc))
    need_col_mask = bc < C and (C % bc != 0)

    # Row axis independent per block -> parallel; on multi-TensorCore chips
    # (v7x) use CORE_PARALLEL so both cores actually split the row grid.
    # Class axis carries the online accumulator -> arbitrary (and last).
    if core_parallel is None:
        core_parallel = _num_tensorcores() > 1
    row_sem = pltpu.CORE_PARALLEL if core_parallel else "parallel"

    x_item = jnp.dtype(x.dtype).itemsize
    y_item = jnp.dtype(y.dtype).itemsize
    footprint = _footprint_bytes(br, bc, x_item, y_item, buffer_count)
    vmem_cap = _vmem_capacity_bytes()
    vmem_limit = int(min(max(32 << 20, int(footprint * 1.5) + (2 << 20)),
                         vmem_cap - (4 << 20)))
    vmem_limit = max(vmem_limit, footprint + (1 << 20))

    cost = pl.CostEstimate(
        flops=6 * N * C,
        transcendentals=N * C + N,
        bytes_accessed=N * C * (x_item + y_item) + N * 4,
    )

    spec_kwargs = {}
    if buffer_count != 2:
        # Optional deeper input pipelining; sweep and keep only if measured.
        spec_kwargs["pipeline_mode"] = pl.Buffered(buffer_count)
    in_specs = [
        pl.BlockSpec((br, bc), lambda i, j: (i, j), **spec_kwargs),
        pl.BlockSpec((br, bc), lambda i, j: (i, j), **spec_kwargs),
    ]
    # Per-row losses as a (br, 1) column block; output traffic is <<1% of the
    # input stream.  TODO(synk): a lane-dense (1, N) output would remove the
    # masked vst on v5e; kept sublane-oriented for lowering robustness.
    out_specs = pl.BlockSpec((br, 1), lambda i, j: (i, 0))

    kernel = _make_kernel(C, bc, assume_normalized_targets, need_col_mask)

    # No jnp.pad: partial edge blocks are handled by Pallas (OOB output rows
    # are masked on store) and by the in-kernel column mask, so garbage rows /
    # columns never reach HBM or the mean.
    losses = pl.pallas_call(
        kernel,
        out_shape=jax.ShapeDtypeStruct((N, 1), jnp.float32),
        grid_spec=pltpu.PrefetchScalarGridSpec(
            num_scalar_prefetch=0,
            grid=grid,
            in_specs=in_specs,
            out_specs=out_specs,
            scratch_shapes=[pltpu.VMEM((br, 1), jnp.float32)] * 4,
        ),
        compiler_params=pltpu.CompilerParams(
            dimension_semantics=(row_sem, "arbitrary"),
            vmem_limit_bytes=vmem_limit,
        ),
        cost_estimate=cost,
    )(x, y)

    losses = losses[:, 0]
    if reduction == "none":
        return losses
    elif reduction == "mean":
        return jnp.mean(losses)
    else:
        raise NotImplementedError(reduction)


def _reference(x, y, reduction="mean"):
    loss = jnp.sum(
        -y.astype(jnp.float32)
        * jax.nn.log_softmax(x.astype(jnp.float32), axis=-1),
        axis=-1,
    )
    return loss.mean() if reduction == "mean" else loss


if __name__ == "__main__":
    key = jax.random.PRNGKey(0)
    kx, ky, kx2, ky2, kx3, ky3 = jax.random.split(key, 6)

    # 1) Small f32 shape exercising the partial (non-multiple-of-8) row block.
    N, C = 13, 32
    x = jax.random.normal(kx, (N, C), dtype=jnp.float32)
    y = jax.nn.softmax(jax.random.normal(ky, (N, C), dtype=jnp.float32), axis=-1)

    loss_mean = jax.block_until_ready(soft_target_cross_entropy(x, y, reduction="mean"))
    loss_none = jax.block_until_ready(soft_target_cross_entropy(x, y, reduction="none"))
    assert jnp.allclose(loss_mean, _reference(x, y, "mean"), atol=1e-5, rtol=1e-5)
    assert jnp.allclose(loss_none, _reference(x, y, "none"), atol=1e-5, rtol=1e-5)

    # 1b) Normalized-target fast path (softmax targets sum to 1).
    loss_norm = jax.block_until_ready(
        soft_target_cross_entropy(x, y, reduction="mean", assume_normalized_targets=True))
    assert jnp.allclose(loss_norm, _reference(x, y, "mean"), atol=1e-5, rtol=1e-5)

    # 2) Native-dtype (bf16) path: halves HBM traffic; math still f32 in-kernel.
    N2, C2 = 16, 128
    xb = jax.random.normal(kx2, (N2, C2), dtype=jnp.float32).astype(jnp.bfloat16)
    yb = jax.nn.softmax(
        jax.random.normal(ky2, (N2, C2), dtype=jnp.float32), axis=-1
    ).astype(jnp.bfloat16)
    got_bf16 = jax.block_until_ready(soft_target_cross_entropy(xb, yb, reduction="mean"))
    assert jnp.allclose(got_bf16, _reference(xb, yb, "mean"), atol=2e-2, rtol=2e-2)

    # 3) Forced class split (online logsumexp + partial-column masking path).
    N3, C3 = 13, 200
    x3 = jax.random.normal(kx3, (N3, C3), dtype=jnp.float32)
    y3 = jax.nn.softmax(jax.random.normal(ky3, (N3, C3), dtype=jnp.float32), axis=-1)
    got_split = jax.block_until_ready(
        soft_target_cross_entropy(x3, y3, reduction="none", block_cols=128))
    assert jnp.allclose(got_split, _reference(x3, y3, "none"), atol=1e-5, rtol=1e-5)

    print("KERNEL_OK")
</pallas_src>

<mosaic_0001>
module attributes {stable_mosaic.version = 11 : i64} {
  func.func @kernel(%arg0: i32, %arg1: i32, %arg2: memref<16x32xf32, #tpu.memory_space<vmem>>, %arg3: memref<16x32xf32, #tpu.memory_space<vmem>>, %arg4: memref<16x1xf32, #tpu.memory_space<vmem>>, %arg5: memref<16x1xf32, #tpu.memory_space<vmem>>, %arg6: memref<16x1xf32, #tpu.memory_space<vmem>>, %arg7: memref<16x1xf32, #tpu.memory_space<vmem>>, %arg8: memref<16x1xf32, #tpu.memory_space<vmem>>) attributes {dimension_semantics = [#tpu.dimension_semantics<parallel>, #tpu.dimension_semantics<arbitrary>], iteration_bounds = array<i64: 1, 1>, scalar_prefetch = 0 : i64, scratch_operands = 4 : i64, tpu.core_type = #tpu.core_type<tc>, window_params = [{transform_indices = @transform_0, window_bounds = array<i64: 16, 32>}, {transform_indices = @transform_1, window_bounds = array<i64: 16, 32>}, {transform_indices = @transform_2, window_bounds = array<i64: 16, 1>}]} {
    %c0_i32 = arith.constant 0 : i32
    %0 = arith.cmpi eq, %arg1, %c0_i32 : i32
    %1 = arith.extui %0 : i1 to i32
    %c0_i32_0 = arith.constant 0 : i32
    %2 = arith.cmpi ne, %1, %c0_i32_0 : i32
    scf.if %2 {
      %cst_27 = arith.constant 0xFF800000 : f32
      %36 = vector.broadcast %cst_27 : f32 to vector<16x1xf32>
      %c0_28 = arith.constant 0 : index
      %c0_29 = arith.constant 0 : index
      %37 = vector.load %arg5[%c0_28, %c0_29] : memref<16x1xf32, #tpu.memory_space<vmem>>, vector<16x1xf32>
      tpu.vector_store %arg5[%c0_28, %c0_29], %36 {strides = array<i32>} : memref<16x1xf32, #tpu.memory_space<vmem>>, vector<16x1xf32>,
      %cst_30 = arith.constant 0.000000e+00 : f32
      %38 = vector.broadcast %cst_30 : f32 to vector<16x1xf32>
      %c0_31 = arith.constant 0 : index
      %c0_32 = arith.constant 0 : index
      %39 = vector.load %arg6[%c0_31, %c0_32] : memref<16x1xf32, #tpu.memory_space<vmem>>, vector<16x1xf32>
      tpu.vector_store %arg6[%c0_31, %c0_32], %38 {strides = array<i32>} : memref<16x1xf32, #tpu.memory_space<vmem>>, vector<16x1xf32>,
      %cst_33 = arith.constant 0.000000e+00 : f32
      %40 = vector.broadcast %cst_33 : f32 to vector<16x1xf32>
      %c0_34 = arith.constant 0 : index
      %c0_35 = arith.constant 0 : index
      %41 = vector.load %arg7[%c0_34, %c0_35] : memref<16x1xf32, #tpu.memory_space<vmem>>, vector<16x1xf32>
      tpu.vector_store %arg7[%c0_34, %c0_35], %40 {strides = array<i32>} : memref<16x1xf32, #tpu.memory_space<vmem>>, vector<16x1xf32>,
      %cst_36 = arith.constant 0.000000e+00 : f32
      %42 = vector.broadcast %cst_36 : f32 to vector<16x1xf32>
      %c0_37 = arith.constant 0 : index
      %c0_38 = arith.constant 0 : index
      %43 = vector.load %arg8[%c0_37, %c0_38] : memref<16x1xf32, #tpu.memory_space<vmem>>, vector<16x1xf32>
      tpu.vector_store %arg8[%c0_37, %c0_38], %42 {strides = array<i32>} : memref<16x1xf32, #tpu.memory_space<vmem>>, vector<16x1xf32>,
    } else {
    }
    %c0 = arith.constant 0 : index
    %c0_1 = arith.constant 0 : index
    %3 = vector.load %arg2[%c0, %c0_1] : memref<16x32xf32, #tpu.memory_space<vmem>>, vector<16x32xf32>
    %c0_2 = arith.constant 0 : index
    %c0_3 = arith.constant 0 : index
    %4 = vector.load %arg3[%c0_2, %c0_3] : memref<16x32xf32, #tpu.memory_space<vmem>>, vector<16x32xf32>
    %5 = arith.mulf %4, %3 : vector<16x32xf32>
    %cst = arith.constant dense<0xFF800000> : vector<16xf32>
    %6 = vector.multi_reduction <maximumf>, %3, %cst [1] : vector<16x32xf32> to vector<16xf32>
    %7 = vector.shape_cast %6 : vector<16xf32> to vector<16x1xf32>
    %c0_4 = arith.constant 0 : index
    %c0_5 = arith.constant 0 : index
    %8 = vector.load %arg5[%c0_4, %c0_5] : memref<16x1xf32, #tpu.memory_space<vmem>>, vector<16x1xf32>
    %9 = arith.maximumf %8, %7 : vector<16x1xf32>
    %c0_6 = arith.constant 0 : index
    %c0_7 = arith.constant 0 : index
    %10 = vector.load %arg5[%c0_6, %c0_7] : memref<16x1xf32, #tpu.memory_space<vmem>>, vector<16x1xf32>
    %11 = arith.subf %10, %9 : vector<16x1xf32>
    %12 = math.exp %11 : vector<16x1xf32>
    %c0_8 = arith.constant 0 : index
    %c0_9 = arith.constant 0 : index
    %13 = vector.load %arg6[%c0_8, %c0_9] : memref<16x1xf32, #tpu.memory_space<vmem>>, vector<16x1xf32>
    %14 = arith.mulf %12, %13 : vector<16x1xf32>
    %15 = vector.broadcast %9 : vector<16x1xf32> to vector<16x32xf32>
    %16 = arith.subf %3, %15 : vector<16x32xf32>
    %17 = math.exp %16 : vector<16x32xf32>
    %cst_10 = arith.constant dense<0.000000e+00> : vector<16xf32>
    %18 = vector.multi_reduction <add>, %17, %cst_10 [1] : vector<16x32xf32> to vector<16xf32>
    %19 = vector.shape_cast %18 : vector<16xf32> to vector<16x1xf32>
    %20 = arith.addf %14, %19 : vector<16x1xf32>
    %c0_11 = arith.constant 0 : index
    %c0_12 = arith.constant 0 : index
    %21 = vector.load %arg6[%c0_11, %c0_12] : memref<16x1xf32, #tpu.memory_space<vmem>>, vector<16x1xf32>
    tpu.vector_store %arg6[%c0_11, %c0_12], %20 {strides = array<i32>} : memref<16x1xf32, #tpu.memory_space<vmem>>, vector<16x1xf32>,
    %c0_13 = arith.constant 0 : index
    %c0_14 = arith.constant 0 : index
    %22 = vector.load %arg8[%c0_13, %c0_14] : memref<16x1xf32, #tpu.memory_space<vmem>>, vector<16x1xf32>
    %cst_15 = arith.constant dense<0.000000e+00> : vector<16xf32>
    %23 = vector.multi_reduction <add>, %5, %cst_15 [1] : vector<16x32xf32> to vector<16xf32>
    %24 = vector.shape_cast %23 : vector<16xf32> to vector<16x1xf32>
    %25 = arith.addf %22, %24 : vector<16x1xf32>
    %c0_16 = arith.constant 0 : index
    %c0_17 = arith.constant 0 : index
    %26 = vector.load %arg8[%c0_16, %c0_17] : memref<16x1xf32, #tpu.memory_space<vmem>>, vector<16x1xf32>
    tpu.vector_store %arg8[%c0_16, %c0_17], %25 {strides = array<i32>} : memref<16x1xf32, #tpu.memory_space<vmem>>, vector<16x1xf32>,
    %c0_18 = arith.constant 0 : index
    %c0_19 = arith.constant 0 : index
    %27 = vector.load %arg7[%c0_18, %c0_19] : memref<16x1xf32, #tpu.memory_space<vmem>>, vector<16x1xf32>
    %cst_20 = arith.constant dense<0.000000e+00> : vector<16xf32>
    %28 = vector.multi_reduction <add>, %4, %cst_20 [1] : vector<16x32xf32> to vector<16xf32>
    %29 = vector.shape_cast %28 : vector<16xf32> to vector<16x1xf32>
    %30 = arith.addf %27, %29 : vector<16x1xf32>
    %c0_21 = arith.constant 0 : index
    %c0_22 = arith.constant 0 : index
    %31 = vector.load %arg7[%c0_21, %c0_22] : memref<16x1xf32, #tpu.memory_space<vmem>>, vector<16x1xf32>
    tpu.vector_store %arg7[%c0_21, %c0_22], %30 {strides = array<i32>} : memref<16x1xf32, #tpu.memory_space<vmem>>, vector<16x1xf32>,
    %c0_23 = arith.constant 0 : index
    %c0_24 = arith.constant 0 : index
    %32 = vector.load %arg5[%c0_23, %c0_24] : memref<16x1xf32, #tpu.memory_space<vmem>>, vector<16x1xf32>
    tpu.vector_store %arg5[%c0_23, %c0_24], %9 {strides = array<i32>} : memref<16x1xf32, #tpu.memory_space<vmem>>, vector<16x1xf32>,
    %c0_i32_25 = arith.constant 0 : i32
    %33 = arith.cmpi eq, %arg1, %c0_i32_25 : i32
    %34 = arith.extui %33 : i1 to i32
    %c0_i32_26 = arith.constant 0 : i32
    %35 = arith.cmpi ne, %34, %c0_i32_26 : i32
    scf.if %35 {
      %c0_27 = arith.constant 0 : index
      %c0_28 = arith.constant 0 : index
      %36 = vector.load %arg5[%c0_27, %c0_28] : memref<16x1xf32, #tpu.memory_space<vmem>>, vector<16x1xf32>
      %c0_29 = arith.constant 0 : index
      %c0_30 = arith.constant 0 : index
      %37 = vector.load %arg6[%c0_29, %c0_30] : memref<16x1xf32, #tpu.memory_space<vmem>>, vector<16x1xf32>
      %38 = math.log %37 : vector<16x1xf32>
      %39 = arith.addf %36, %38 : vector<16x1xf32>
      %c0_31 = arith.constant 0 : index
      %c0_32 = arith.constant 0 : index
      %40 = vector.load %arg7[%c0_31, %c0_32] : memref<16x1xf32, #tpu.memory_space<vmem>>, vector<16x1xf32>
      %41 = arith.mulf %39, %40 : vector<16x1xf32>
      %c0_33 = arith.constant 0 : index
      %c0_34 = arith.constant 0 : index
      %42 = vector.load %arg8[%c0_33, %c0_34] : memref<16x1xf32, #tpu.memory_space<vmem>>, vector<16x1xf32>
      %43 = arith.subf %41, %42 : vector<16x1xf32>
      %c0_35 = arith.constant 0 : index
      %c0_36 = arith.constant 0 : index
      %44 = vector.load %arg4[%c0_35, %c0_36] : memref<16x1xf32, #tpu.memory_space<vmem>>, vector<16x1xf32>
      tpu.vector_store %arg4[%c0_35, %c0_36], %43 {strides = array<i32>} : memref<16x1xf32, #tpu.memory_space<vmem>>, vector<16x1xf32>,
    } else {
    }
    return
  }
  func.func @transform_0(%arg0: i32, %arg1: i32) -> (i32, i32) {
    %c0_i32 = arith.constant 0 : i32
    return %arg0, %arg1 : i32, i32
  }
  func.func @transform_1(%arg0: i32, %arg1: i32) -> (i32, i32) {
    %c0_i32 = arith.constant 0 : i32
    return %arg0, %arg1 : i32, i32
  }
  func.func @transform_2(%arg0: i32, %arg1: i32) -> (i32, i32) {
    %c0_i32 = arith.constant 0 : i32
    %c0_i32_0 = arith.constant 0 : i32
    return %arg0, %c0_i32 : i32, i32
  }
}

</mosaic_0001>

<llo_original>
// kernel: tpu_custom_call.1
$region0: #{tpu_custom_call.1}
  #allocation0 [shape = 'u32[]', space=smem, size = 0x4, offset = 0x4, fixed_abs, tag = 'smem constant byte address 0x4 - core index']
  #allocation1 [shape = 'u32[144,128]{1,0:T(1,128)}', space=vmem, size = 0x12000, scoped, tag = 'internal scratch']
  #allocation2 [shape = 'f32[16,1]{1,0:T(8,128)}', space=vmem, size = 0x2000, scoped, tag = 'scratch operand']
  #allocation3 [shape = 'f32[16,1]{1,0:T(8,128)}', space=vmem, size = 0x2000, scoped, tag = 'scratch operand']
  #allocation4 [shape = 'f32[16,1]{1,0:T(8,128)}', space=vmem, size = 0x2000, scoped, tag = 'scratch operand']
  #allocation5 [shape = 'f32[16,1]{1,0:T(8,128)}', space=vmem, size = 0x2000, scoped, tag = 'scratch operand']
  %s0 = inlined_call_operand.hbm [shape: f32[13,32], index: 0, kind: input, shape index: {}]
  %s1 = inlined_call_operand.hbm [shape: f32[13,32], index: 1, kind: input, shape index: {}]
  %s2 = inlined_call_operand.vmem [shape: f32[13,1], index: 2, kind: output, shape index: {}]
  %s3 = sld [smem:[#allocation0]]
  $region34: #{tpu_custom_call.1} parent=0
    _
  %s5 = ssub.s32 1, %s3
  %s6 = scalar_select 0, %s5, %s3
  $region1: #{tpu_custom_call.1} parent=0
    #allocation6 [shape = 'u8[8192]{0}', space=vmem, size = 0x2000, scoped, tag = 'input window, operand 0, single buffered']
    #allocation7 [shape = 's32[1]{0}', space=sflag, size = 0x4, scoped, tag = 'scoped memory for tpu_custom_call.1']
    #allocation8 [shape = 'u8[8192]{0}', space=vmem, size = 0x2000, scoped, tag = 'input window, operand 1, single buffered']
    #allocation9 [shape = 's32[1]{0}', space=sflag, size = 0x4, scoped, tag = 'scoped memory for tpu_custom_call.1']
    %7 = vsyncpa [#allocation7], 0
    %8 = vsyncpa [#allocation9], 0
    // Predicated region
    $region2: #{tpu_custom_call.1} parent=1 // pred_check
      _
    $region3: #{tpu_custom_call.1} parent=1 // pred_check_branch
      %10 = sbr.rel (0) target = $region5
    $region4: #{tpu_custom_call.1} parent=1 // pred_region
      %s12 = ssub.s32 256, 256
      %13 = vsyncadd [#allocation7], %s12
      %s14 = sshll.u32 [#allocation6], 4
      %s15 = int_to_ptr.vmem [resolvable:$true] %s14
      %20 = dma.hbm_to_vmem [thread:$0]  %s0, 256, %s15, [#allocation7], 128, 128, 8
    $region5: #{tpu_custom_call.1} parent=1 // pred_fallthru
      _
    // Predicated region
    $region6: #{tpu_custom_call.1} parent=1 // pred_check
      _
    $region7: #{tpu_custom_call.1} parent=1 // pred_check_branch
      %22 = sbr.rel (0) target = $region9
    $region8: #{tpu_custom_call.1} parent=1 // pred_region
      %s24 = ssub.s32 256, 256
      %25 = vsyncadd [#allocation9], %s24
      %s26 = sshll.u32 [#allocation8], 4
      %s27 = int_to_ptr.vmem [resolvable:$true] %s26
      %32 = dma.hbm_to_vmem [thread:$0]  %s1, 256, %s27, [#allocation9], 128, 128, 8
    $region9: #{tpu_custom_call.1} parent=1 // pred_fallthru
      _
    // Predicated region
    $region10: #{tpu_custom_call.1} parent=1 // pred_check
      _
    $region11: #{tpu_custom_call.1} parent=1 // pred_check_branch
      %34 = sbr.rel (0) target = $region13
    $region12: #{tpu_custom_call.1} parent=1 // pred_region
      %35 = dma.done [#allocation7], 256
    $region13: #{tpu_custom_call.1} parent=1 // pred_fallthru
      _
    // Predicated region
    $region14: #{tpu_custom_call.1} parent=1 // pred_check
      _
    $region15: #{tpu_custom_call.1} parent=1 // pred_check_branch
      %37 = sbr.rel (0) target = $region17
    $region16: #{tpu_custom_call.1} parent=1 // pred_region
      %38 = dma.done [#allocation9], 256
    $region17: #{tpu_custom_call.1} parent=1 // pred_fallthru
      _
    %p39 = scmp.eq.s32.totalorder 0, 0
    // Predicated region
    $region18: #{tpu_custom_call.1} parent=1 // pred_check
      %p40 = pneg %p39
    $region19: #{tpu_custom_call.1} parent=1 // pred_check_branch
      %42 = sbr.rel (%p40) target = $region21
    $region20: #{tpu_custom_call.1} parent=1 // pred_region
      %vm43 = vcmask 7168
      %44 = vst.msk [vmem:[#allocation2] sm:$0xff] %vm43, -inf
      %45 = vst.msk [vmem:[#allocation2 + $0x8] sm:$0xff] %vm43, -inf
      %46 = vst.msk [vmem:[#allocation3] sm:$0xff] %vm43, 0.0
      %47 = vst.msk [vmem:[#allocation3 + $0x8] sm:$0xff] %vm43, 0.0
      %48 = vst.msk [vmem:[#allocation4] sm:$0xff] %vm43, 0.0
      %49 = vst.msk [vmem:[#allocation4 + $0x8] sm:$0xff] %vm43, 0.0
      %50 = vst.msk [vmem:[#allocation5] sm:$0xff] %vm43, 0.0
      %51 = vst.msk [vmem:[#allocation5 + $0x8] sm:$0xff] %vm43, 0.0
    $region21: #{tpu_custom_call.1} parent=1 // pred_fallthru
      _
    %v52 = vld [vmem:[#allocation6] sm:$0xff]
    %v53 = vld [vmem:[#allocation6 + $0x8] sm:$0xff]
    %v54 = vld [vmem:[#allocation8] sm:$0xff]
    %v55 = vld [vmem:[#allocation8 + $0x8] sm:$0xff]
    %v56 = vmul.f32 %v54, %v52
    %v57 = vmul.f32 %v55, %v53
    %vm58 = vcmask 261120
    %v59 = vsel %vm58, %v52, -inf
    %60 = vmax.xlane.f32.xlu0 %v59
    %v61 = vpop.xlane.xlu0 %60
    %v62 = vsel %vm58, %v53, -inf
    %63 = vmax.xlane.f32.xlu0 %v62
    %v64 = vpop.xlane.xlu0 %63
    %v65 = vld [vmem:[#allocation2] sm:$0xff]
    %v66 = vld [vmem:[#allocation2 + $0x8] sm:$0xff]
    %v67 = vmax.f32 %v65, %v61
    %v68 = vmax.f32 %v66, %v64
    %v69 = vsub.f32 %v65, %v67
    %v70 = vsub.f32 %v66, %v68
    %v71 = vmul.f32 %v69, 1.442695
    %v72 = vpow.pop %v71
    %v73 = vmul.f32 %v70, 1.442695
    %v74 = vpow.pop %v73
    %v75 = vld [vmem:[#allocation3] sm:$0xff]
    %v76 = vld [vmem:[#allocation3 + $0x8] sm:$0xff]
    %v77 = vmul.f32 %v72, %v75
    %v78 = vmul.f32 %v74, %v76
    %80 = vset.pattern.permute.xlu0 0
    %81 = vperm.xlu0 %80, %v67
    %v82 = vpop.permute.xlu0 %81
    %85 = vset.pattern.permute.xlu0 0
    %86 = vperm.xlu0 %85, %v68
    %v87 = vpop.permute.xlu0 %86
    %v89 = vsub.f32 %v52, %v82
    %v90 = vsub.f32 %v53, %v87
    %v91 = vmul.f32 %v89, 1.442695
    %v92 = vpow.pop %v91
    %v93 = vmul.f32 %v90, 1.442695
    %v94 = vpow.pop %v93
    %v95 = vsel %vm58, %v92, 0.0
    %96 = vadd.xlane.f32.xlu0 %v95
    %v97 = vpop.xlane.xlu0 %96
    %v98 = vsel %vm58, %v94, 0.0
    %99 = vadd.xlane.f32.xlu0 %v98
    %v100 = vpop.xlane.xlu0 %99
    %v101 = vadd.f32 %v77, %v97
    %v102 = vadd.f32 %v78, %v100
    %vm103 = vcmask 7168
    %104 = vst.msk [vmem:[#allocation3] sm:$0xff] %vm103, %v101
    %105 = vst.msk [vmem:[#allocation3 + $0x8] sm:$0xff] %vm103, %v102
    %v106 = vld [vmem:[#allocation5] sm:$0xff]
    %v107 = vld [vmem:[#allocation5 + $0x8] sm:$0xff]
    %v108 = vsel %vm58, %v56, 0.0
    %109 = vadd.xlane.f32.xlu0 %v108
    %v110 = vpop.xlane.xlu0 %109
    %v111 = vsel %vm58, %v57, 0.0
    %112 = vadd.xlane.f32.xlu0 %v111
    %v113 = vpop.xlane.xlu0 %112
    %v114 = vadd.f32 %v106, %v110
    %v115 = vadd.f32 %v107, %v113
    %116 = vst.msk [vmem:[#allocation5] sm:$0xff] %vm103, %v114
    %117 = vst.msk [vmem:[#allocation5 + $0x8] sm:$0xff] %vm103, %v115
    %v118 = vld [vmem:[#allocation4] sm:$0xff]
    %v119 = vld [vmem:[#allocation4 + $0x8] sm:$0xff]
    %v120 = vsel %vm58, %v54, 0.0
    %121 = vadd.xlane.f32.xlu0 %v120
    %v122 = vpop.xlane.xlu0 %121
    %v123 = vsel %vm58, %v55, 0.0
    %124 = vadd.xlane.f32.xlu0 %v123
    %v125 = vpop.xlane.xlu0 %124
    %v126 = vadd.f32 %v118, %v122
    %v127 = vadd.f32 %v119, %v125
    %128 = vst.msk [vmem:[#allocation4] sm:$0xff] %vm103, %v126
    %129 = vst.msk [vmem:[#allocation4 + $0x8] sm:$0xff] %vm103, %v127
    %130 = vst.msk [vmem:[#allocation2] sm:$0xff] %vm103, %v67
    %131 = vst.msk [vmem:[#allocation2 + $0x8] sm:$0xff] %vm103, %v68
    // Predicated region
    $region22: #{tpu_custom_call.1} parent=1 // pred_check
      %p132 = pneg %p39
    $region23: #{tpu_custom_call.1} parent=1 // pred_check_branch
      %134 = sbr.rel (%p132) target = $region25
    $region24: #{tpu_custom_call.1} parent=1 // pred_region
      %v135 = vld [vmem:[#allocation2] sm:$0xff]
      %v136 = vld [vmem:[#allocation2 + $0x8] sm:$0xff]
      %v137 = vld [vmem:[#allocation3] sm:$0xff]
      %v138 = vld [vmem:[#allocation3 + $0x8] sm:$0xff]
      %v139 = vlog2.pop %v137
      %v140 = vmul.f32 %v139, 0.6931472
      %v141 = vlog2.pop %v138
      %v142 = vmul.f32 %v141, 0.6931472
      %v143 = vadd.f32 %v135, %v140
      %v144 = vadd.f32 %v136, %v142
      %v145 = vld [vmem:[#allocation4] sm:$0xff]
      %v146 = vld [vmem:[#allocation4 + $0x8] sm:$0xff]
      %v147 = vmul.f32 %v143, %v145
      %v148 = vmul.f32 %v144, %v146
      %v149 = vld [vmem:[#allocation5] sm:$0xff]
      %v150 = vld [vmem:[#allocation5 + $0x8] sm:$0xff]
      %v151 = vsub.f32 %v147, %v149
      %v152 = vsub.f32 %v148, %v150
      %153 = vst.msk [vmem:[%s2] sm:$0xff] %vm103, %v151
      %154 = vst.msk [vmem:[%s2 + $0x8] sm:$0xff] %vm103, %v152
    $region25: #{tpu_custom_call.1} parent=1 // pred_fallthru
      _
    // Predicated region
    $region26: #{tpu_custom_call.1} parent=1 // pred_check
      _
    $region27: #{tpu_custom_call.1} parent=1 // pred_check_branch
      %156 = sbr.rel (0) target = $region29
    $region28: #{tpu_custom_call.1} parent=1 // pred_region
      _
    $region29: #{tpu_custom_call.1} parent=1 // pred_fallthru
      _
    // Predicated region
    $region30: #{tpu_custom_call.1} parent=1 // pred_check
      _
    $region31: #{tpu_custom_call.1} parent=1 // pred_check_branch
      %158 = sbr.rel (0) target = $region33
    $region32: #{tpu_custom_call.1} parent=1 // pred_region
      _
    $region33: #{tpu_custom_call.1} parent=1 // pred_fallthru
      _
    %159 = vsyncpa [#allocation7], 1
    %160 = vsyncpa [#allocation9], 1

</llo_original>
